<compile_context>
chip_gen: v7x
topology: tpu7x:2x2x1
jax: 0.10.0
libtpu: 0.0.40
codegen_flags: <defaults>
</compile_context>

<pallas_src>
import functools

import jax
import jax.numpy as jnp
from jax.experimental import pallas as pl
from jax.experimental.pallas import tpu as pltpu


def _ceil_to(x, m):
    return ((x + m - 1) // m) * m


def _mdn_kernel(x_ref, w1_ref, b1_ref, w2_ref, b2_ref, out_ref, *, kp):
    """body Linear + ReLU, fused head Linear, exp on the log-sd half.

    x_ref  : (TB, Din)   bf16
    w1_ref : (Din, H)    bf16      b1_ref : (1, H)     f32
    w2_ref : (H, 2*KP)   bf16      b2_ref : (1, 2*KP)  f32   [mean | log_sd]
    out_ref: (TB, 2*KP)  out dtype  -> [:, :KP] = mean, [:, KP:] = sd
    """
    # body: bf16 MXU dot, f32 accumulate; bias + ReLU epilogue in f32
    # (v5e has no bf16 VPU/EUP).
    h = jnp.dot(x_ref[...], w1_ref[...], preferred_element_type=jnp.float32)
    h = jnp.maximum(h + b1_ref[...], 0.0).astype(jnp.bfloat16)
    # head: one N = 2*KP dot fills the full MXU width instead of two KP-wide
    # dots; result stays in f32.
    p = jnp.dot(h, w2_ref[...], preferred_element_type=jnp.float32) + b2_ref[...]
    # KP is a multiple of 128 -> both slices/stores are whole-vreg lane-aligned.
    out_ref[:, :kp] = p[:, :kp].astype(out_ref.dtype)
    # exp only on the log-sd half (no clamp, matching torch.exp; padded batch
    # rows are x=0 -> relu(b1) -> finite, and are sliced off in the wrapper).
    out_ref[:, kp:] = jnp.exp(p[:, kp:]).astype(out_ref.dtype)


def mixture_diag_normal_forward(x, w1, b1, w2, b2, n_components, output_dim,
                                *, out_dtype=jnp.float32, force_pallas=False):
    """Returns (mean, sd) == (loc, scale) of the torch module's Normal output.

    x: (B, Din) f32; w1: (Din, H); b1: (1, H); w2: (H, 2*K); b2: (1, 2*K)
    with K = n_components * output_dim.  Outputs: (B, n_components, output_dim).
    """
    B, Din = x.shape
    H = w1.shape[1]
    P = w2.shape[1]
    K = P // 2
    assert K == n_components * output_dim

    # Tiny problems are pure pallas_call/DMA fixed cost; let XLA fuse them.
    if not force_pallas and (B < 256 or K < 128):
        h = jnp.maximum(x @ w1 + b1, 0.0)
        p = h @ w2 + b2
        mean = p[:, :K].reshape(B, n_components, output_dim)
        sd = jnp.exp(p[:, K:]).reshape(B, n_components, output_dim)
        return mean.astype(out_dtype), sd.astype(out_dtype)

    # --- layout prep (wrapper-side, zero-cost w.r.t. the kernel math) -------
    # Fused head weight: [mean half | log-sd half], each half zero-padded to
    # KP lanes so the kernel's split/stores are 128-aligned and lane-dense.
    KP = _ceil_to(max(K, 128), 128)
    padK = KP - K
    KP2 = 2 * KP
    w2f = jnp.concatenate(
        [jnp.pad(w2[:, :K], ((0, 0), (0, padK))),
         jnp.pad(w2[:, K:], ((0, 0), (0, padK)))], axis=1)            # (H, 2*KP)
    b2f = jnp.concatenate(
        [jnp.pad(b2[:, :K], ((0, 0), (0, padK))),
         jnp.pad(b2[:, K:], ((0, 0), (0, padK)))], axis=1)            # (1, 2*KP)

    out_itemsize = jnp.dtype(out_dtype).itemsize
    weight_bytes_1buf = 2 * (Din * H + H * KP2) + 4 * (H + KP2)
    # Resident weights (constant index_map) never re-DMA, so a second pipeline
    # buffer is pure VMEM waste; only bother requesting single-buffering when
    # the weights are big enough to matter (v7x: 64 MiB physical VMEM).
    single_buffer_weights = weight_bytes_1buf > (8 << 20)
    n_wbuf = 1 if single_buffer_weights else 2

    # Batch tile: multiple of 16 (bf16 packs 16 rows/vreg), >= 2 grid steps
    # whenever possible (v7x megacore), as large as a ~40 MiB VMEM budget
    # allows (amortize the ~0.35 us per-grid-step fixed cost).
    row_bytes = (2 * Din * 2                  # x tile, bf16, double-buffered
                 + 2 * KP2 * out_itemsize     # output tile, double-buffered
                 + H * 4 + KP2 * 4)           # h / p f32 intermediates
    budget = 40 << 20
    tb_cap = max(16, ((budget - n_wbuf * weight_bytes_1buf) // row_bytes) // 16 * 16)
    tb_cap = min(tb_cap, 2048)
    TB = min(tb_cap, _ceil_to(pl.cdiv(B, 2), 16))
    B_pad = _ceil_to(B, TB)
    x_pad = jnp.pad(x, ((0, B_pad - B), (0, 0))) if B_pad != B else x

    # bf16 MXU inputs; biases / accumulation / epilogue stay in f32.
    x_bf = x_pad.astype(jnp.bfloat16)
    w1_bf = w1.astype(jnp.bfloat16)
    w2_bf = w2f.astype(jnp.bfloat16)

    est_vmem = (n_wbuf * 2 * (Din * H + H * KP2) + 2 * 4 * (H + KP2)
                + TB * row_bytes)
    vmem_limit = int(min(max(est_vmem + (8 << 20), 32 << 20), 100 << 20))

    def _const(i):
        return (0, 0)

    def _wspec(shape):
        if single_buffer_weights:
            # TODO(synk): for body weights beyond ~16-24 MiB bf16 a Din-
            # reduction grid axis ("arbitrary" + f32 accumulator scratch) would
            # beat monolithic residency, especially on v7x's 64 MiB VMEM.
            return pl.BlockSpec(shape, _const, pipeline_mode=pl.Buffered(1))
        return pl.BlockSpec(shape, _const)

    out_p = pl.pallas_call(
        functools.partial(_mdn_kernel, kp=KP),
        out_shape=jax.ShapeDtypeStruct((B_pad, KP2), out_dtype),
        grid=(B_pad // TB,),
        in_specs=[
            pl.BlockSpec((TB, Din), lambda i: (i, 0)),    # x (batch-tiled)
            _wspec((Din, H)),                             # body weight (resident)
            _wspec((1, H)),                               # body bias
            _wspec((H, KP2)),                             # fused head weight
            _wspec((1, KP2)),                             # fused head bias
        ],
        out_specs=pl.BlockSpec((TB, KP2), lambda i: (i, 0)),
        compiler_params=pltpu.CompilerParams(
            dimension_semantics=("parallel",),
            vmem_limit_bytes=vmem_limit,
        ),
    )(x_bf, w1_bf, b1, w2_bf, b2f)

    # Strip batch/lane padding; matches torch's split/stack/transpose reshape.
    mean = out_p[:B, :K].reshape(B, n_components, output_dim)
    sd = out_p[:B, KP:KP + K].reshape(B, n_components, output_dim)
    # TODO(synk): torch.distributions.Normal has no Pallas equivalent; we
    # return its parameters (loc=mean, scale=sd) instead.
    return mean, sd


def layer_init_linear(key, in_dim, out_dim, w_scale=1.0):
    """Deterministic equivalent of layer_init(nn.Linear(in_dim, out_dim))."""
    # PyTorch weight shape is (out, in) with orthogonal init; we store (in, out).
    w = jax.nn.initializers.orthogonal(scale=w_scale)(
        key, (out_dim, in_dim), jnp.float32)
    b = jnp.zeros((1, out_dim), jnp.float32)
    return w.T, b


def ref_forward_f32(x, w1, b1, w2, b2, n_components, output_dim):
    """Pure-f32 reference: the true PyTorch-module numerics."""
    h = jnp.maximum(x @ w1 + b1, 0.0)
    p = h @ w2 + b2
    K = p.shape[1] // 2
    mean = p[:, :K].reshape(x.shape[0], n_components, output_dim)
    sd = jnp.exp(p[:, K:]).reshape(x.shape[0], n_components, output_dim)
    return mean, sd


def ref_forward_bf16(x, w1, b1, w2, b2, n_components, output_dim):
    """Reference matching the kernel's bf16-matmul / f32-epilogue numerics."""
    xb = x.astype(jnp.bfloat16)
    w1b = w1.astype(jnp.bfloat16)
    w2b = w2.astype(jnp.bfloat16)
    h = jnp.maximum(
        jnp.dot(xb, w1b, preferred_element_type=jnp.float32) + b1, 0.0
    ).astype(jnp.bfloat16)
    p = jnp.dot(h, w2b, preferred_element_type=jnp.float32) + b2
    K = p.shape[1] // 2
    mean = p[:, :K].reshape(x.shape[0], n_components, output_dim)
    sd = jnp.exp(p[:, K:]).reshape(x.shape[0], n_components, output_dim)
    return mean, sd


if __name__ == "__main__":
    def run_case(key, B, D_in, feature_dim, output_dim, n_components):
        k_x, k_body, k_fc = jax.random.split(key, 3)
        x = jax.random.normal(k_x, (B, D_in), dtype=jnp.float32)
        w1, b1 = layer_init_linear(k_body, D_in, feature_dim)
        w2, b2 = layer_init_linear(k_fc, feature_dim, 2 * output_dim * n_components)

        mean, sd = mixture_diag_normal_forward(
            x, w1, b1, w2, b2, n_components=n_components, output_dim=output_dim,
            force_pallas=True)                 # exercise the Pallas path
        jax.block_until_ready((mean, sd))

        assert mean.shape == (B, n_components, output_dim)
        assert sd.shape == (B, n_components, output_dim)
        assert bool(jnp.all(sd > 0))
        # tight check vs the bf16-matched reference (same numerics as kernel)
        m_bf, s_bf = ref_forward_bf16(x, w1, b1, w2, b2, n_components, output_dim)
        assert jnp.allclose(mean, m_bf, atol=2e-3, rtol=2e-3)
        assert jnp.allclose(sd, s_bf, atol=2e-3, rtol=2e-3)
        # loose sanity check vs the true f32 module numerics (bf16 cast error)
        m_f32, s_f32 = ref_forward_f32(x, w1, b1, w2, b2, n_components, output_dim)
        assert jnp.allclose(mean, m_f32, atol=1e-1, rtol=1e-1)
        assert jnp.allclose(sd, s_f32, atol=1e-1, rtol=1e-1)

    key = jax.random.PRNGKey(0)
    k_small, k_mid = jax.random.split(key)
    # tiny demo shape (single grid step, K padded to 128 lanes)
    run_case(k_small, B=8, D_in=16, feature_dim=32, output_dim=4, n_components=3)
    # moderate shape: exercises batch padding, >= 2 "parallel" grid steps
    # (v7x megacore), and the fused 2*KP head/output path
    run_case(k_mid, B=600, D_in=64, feature_dim=128, output_dim=8, n_components=5)

    print("KERNEL_OK")
</pallas_src>

<mosaic_0001>
module attributes {stable_mosaic.version = 11 : i64} {
  func.func @_mdn_kernel(%arg0: i32, %arg1: memref<16x16xbf16, #tpu.memory_space<vmem>>, %arg2: memref<16x32xbf16, #tpu.memory_space<vmem>>, %arg3: memref<1x32xf32, #tpu.memory_space<vmem>>, %arg4: memref<32x256xbf16, #tpu.memory_space<vmem>>, %arg5: memref<1x256xf32, #tpu.memory_space<vmem>>, %arg6: memref<16x256xf32, #tpu.memory_space<vmem>>) attributes {dimension_semantics = [#tpu.dimension_semantics<parallel>], iteration_bounds = array<i64: 1>, scalar_prefetch = 0 : i64, scratch_operands = 0 : i64, tpu.core_type = #tpu.core_type<tc>, window_params = [{transform_indices = @transform_0, window_bounds = array<i64: 16, 16>}, {pipeline_mode = #tpu.pipeline_mode<synchronous>, transform_indices = @transform_1, window_bounds = array<i64: 16, 32>}, {pipeline_mode = #tpu.pipeline_mode<synchronous>, transform_indices = @transform_2, window_bounds = array<i64: 1, 32>}, {pipeline_mode = #tpu.pipeline_mode<synchronous>, transform_indices = @transform_3, window_bounds = array<i64: 32, 256>}, {pipeline_mode = #tpu.pipeline_mode<synchronous>, transform_indices = @transform_4, window_bounds = array<i64: 1, 256>}, {transform_indices = @transform_5, window_bounds = array<i64: 16, 256>}]} {
    %c0 = arith.constant 0 : index
    %c0_0 = arith.constant 0 : index
    %0 = vector.load %arg1[%c0, %c0_0] : memref<16x16xbf16, #tpu.memory_space<vmem>>, vector<16x16xbf16>
    %c0_1 = arith.constant 0 : index
    %c0_2 = arith.constant 0 : index
    %1 = vector.load %arg2[%c0_1, %c0_2] : memref<16x32xbf16, #tpu.memory_space<vmem>>, vector<16x32xbf16>
    %cst = arith.constant dense<0.000000e+00> : vector<16x32xf32>
    %2 = tpu.matmul %0, %1, %cst {dimension_numbers = #tpu.dot_dimension_numbers<[1], [0], [0], [1], [0, 0, 1, 1], [], []>} : vector<16x16xbf16>, vector<16x32xbf16>, vector<16x32xf32> -> vector<16x32xf32>
    %c0_3 = arith.constant 0 : index
    %c0_4 = arith.constant 0 : index
    %3 = vector.load %arg3[%c0_3, %c0_4] : memref<1x32xf32, #tpu.memory_space<vmem>>, vector<1x32xf32>
    %4 = vector.broadcast %3 : vector<1x32xf32> to vector<16x32xf32>
    %5 = arith.addf %2, %4 : vector<16x32xf32>
    %cst_5 = arith.constant 0.000000e+00 : f32
    %6 = vector.broadcast %cst_5 : f32 to vector<16x32xf32>
    %7 = arith.maximumf %5, %6 : vector<16x32xf32>
    %8 = arith.truncf %7 : vector<16x32xf32> to vector<16x32xbf16>
    %c0_6 = arith.constant 0 : index
    %c0_7 = arith.constant 0 : index
    %9 = vector.load %arg4[%c0_6, %c0_7] : memref<32x256xbf16, #tpu.memory_space<vmem>>, vector<32x256xbf16>
    %cst_8 = arith.constant dense<0.000000e+00> : vector<16x256xf32>
    %10 = tpu.matmul %8, %9, %cst_8 {dimension_numbers = #tpu.dot_dimension_numbers<[1], [0], [0], [1], [0, 0, 1, 1], [], []>} : vector<16x32xbf16>, vector<32x256xbf16>, vector<16x256xf32> -> vector<16x256xf32>
    %c0_9 = arith.constant 0 : index
    %c0_10 = arith.constant 0 : index
    %11 = vector.load %arg5[%c0_9, %c0_10] : memref<1x256xf32, #tpu.memory_space<vmem>>, vector<1x256xf32>
    %12 = vector.broadcast %11 : vector<1x256xf32> to vector<16x256xf32>
    %13 = arith.addf %10, %12 : vector<16x256xf32>
    %14 = vector.extract_strided_slice %13 {offsets = [0, 0], sizes = [16, 128], strides = [1, 1]} : vector<16x256xf32> to vector<16x128xf32>
    %c0_11 = arith.constant 0 : index
    %c0_12 = arith.constant 0 : index
    %15 = vector.load %arg6[%c0_11, %c0_12] : memref<16x256xf32, #tpu.memory_space<vmem>>, vector<16x128xf32>
    tpu.vector_store %arg6[%c0_11, %c0_12], %14 {strides = array<i32>} : memref<16x256xf32, #tpu.memory_space<vmem>>, vector<16x128xf32>,
    %16 = vector.extract_strided_slice %13 {offsets = [0, 128], sizes = [16, 128], strides = [1, 1]} : vector<16x256xf32> to vector<16x128xf32>
    %17 = math.exp %16 : vector<16x128xf32>
    %c0_13 = arith.constant 0 : index
    %c128 = arith.constant 128 : index
    %18 = vector.load %arg6[%c0_13, %c128] : memref<16x256xf32, #tpu.memory_space<vmem>>, vector<16x128xf32>
    tpu.vector_store %arg6[%c0_13, %c128], %17 {strides = array<i32>} : memref<16x256xf32, #tpu.memory_space<vmem>>, vector<16x128xf32>,
    return
  }
  func.func @transform_0(%arg0: i32) -> (i32, i32) {
    %c0_i32 = arith.constant 0 : i32
    %c0_i32_0 = arith.constant 0 : i32
    return %arg0, %c0_i32 : i32, i32
  }
  func.func @transform_1(%arg0: i32) -> (i32, i32) {
    %c0_i32 = arith.constant 0 : i32
    %c0_i32_0 = arith.constant 0 : i32
    %c0_i32_1 = arith.constant 0 : i32
    return %c0_i32, %c0_i32_0 : i32, i32
  }
  func.func @transform_2(%arg0: i32) -> (i32, i32) {
    %c0_i32 = arith.constant 0 : i32
    %c0_i32_0 = arith.constant 0 : i32
    %c0_i32_1 = arith.constant 0 : i32
    return %c0_i32, %c0_i32_0 : i32, i32
  }
  func.func @transform_3(%arg0: i32) -> (i32, i32) {
    %c0_i32 = arith.constant 0 : i32
    %c0_i32_0 = arith.constant 0 : i32
    %c0_i32_1 = arith.constant 0 : i32
    return %c0_i32, %c0_i32_0 : i32, i32
  }
  func.func @transform_4(%arg0: i32) -> (i32, i32) {
    %c0_i32 = arith.constant 0 : i32
    %c0_i32_0 = arith.constant 0 : i32
    %c0_i32_1 = arith.constant 0 : i32
    return %c0_i32, %c0_i32_0 : i32, i32
  }
  func.func @transform_5(%arg0: i32) -> (i32, i32) {
    %c0_i32 = arith.constant 0 : i32
    %c0_i32_0 = arith.constant 0 : i32
    return %arg0, %c0_i32 : i32, i32
  }
}

</mosaic_0001>

<llo_original>
// kernel: tpu_custom_call.1
$region0: #{tpu_custom_call.1}
  #allocation0 [shape = 'u32[]', space=smem, size = 0x4, offset = 0x4, fixed_abs, tag = 'smem constant byte address 0x4 - core index']
  #allocation1 [shape = 'u32[144,128]{1,0:T(1,128)}', space=vmem, size = 0x12000, scoped, tag = 'internal scratch']
  %s0 = inlined_call_operand.hbm [shape: bf16[16,16], index: 0, kind: input, shape index: {}]
  %s1 = inlined_call_operand.hbm [shape: bf16[16,32], index: 1, kind: input, shape index: {}]
  %s2 = inlined_call_operand.vmem [shape: f32[1,32], index: 2, kind: input, shape index: {}]
  %s3 = inlined_call_operand.hbm [shape: bf16[32,256], index: 3, kind: input, shape index: {}]
  %s4 = inlined_call_operand.vmem [shape: f32[1,256], index: 4, kind: input, shape index: {}]
  %s5 = inlined_call_operand.hbm [shape: f32[16,256], index: 5, kind: output, shape index: {}]
  %s6 = sld [smem:[#allocation0]]
  $region42: #{tpu_custom_call.1} parent=0
    _
  %s8 = ssub.s32 1, %s6
  %s9 = scalar_select 0, %s8, %s6
  $region1: #{tpu_custom_call.1} parent=0
    #allocation2 [shape = 'u8[4096]{0}', space=vmem, size = 0x1000, scoped, tag = 'input window, operand 0, single buffered']
    #allocation3 [shape = 's32[1]{0}', space=sflag, size = 0x4, scoped, tag = 'scoped memory for tpu_custom_call.1']
    #allocation4 [shape = 's32[1]{0}', space=sflag, size = 0x4, scoped, tag = 'scoped memory for tpu_custom_call.1']
    #allocation5 [shape = 'u8[4096]{0}', space=vmem, size = 0x1000, scoped, tag = 'input window, operand 1, single buffered']
    #allocation6 [shape = 's32[1]{0}', space=sflag, size = 0x4, scoped, tag = 'scoped memory for tpu_custom_call.1']
    #allocation7 [shape = 'u8[16384]{0}', space=vmem, size = 0x4000, scoped, tag = 'input window, operand 3, single buffered']
    #allocation8 [shape = 'u8[16384]{0}', space=vmem, size = 0x4000, scoped, tag = 'output window, operand 0, single buffered']
    %10 = vsyncpa [#allocation3], 0
    %11 = vsyncpa [#allocation6], 0
    %12 = vsyncpa [#allocation4], 0
    // Predicated region
    $region2: #{tpu_custom_call.1} parent=1 // pred_check
      _
    $region3: #{tpu_custom_call.1} parent=1 // pred_check_branch
      %14 = sbr.rel (0) target = $region5
    $region4: #{tpu_custom_call.1} parent=1 // pred_region
      %s16 = ssub.s32 128, 128
      %17 = vsyncadd [#allocation3], %s16
      %s18 = sshll.u32 [#allocation2], 4
      %s19 = int_to_ptr.vmem [resolvable:$true] %s18
      %24 = dma.hbm_to_vmem [thread:$0]  %s0, 128, %s19, [#allocation3], 64, 64, 4
    $region5: #{tpu_custom_call.1} parent=1 // pred_fallthru
      _
    // Predicated region
    $region6: #{tpu_custom_call.1} parent=1 // pred_check
      _
    $region7: #{tpu_custom_call.1} parent=1 // pred_check_branch
      %26 = sbr.rel (0) target = $region9
    $region8: #{tpu_custom_call.1} parent=1 // pred_region
      %s28 = ssub.s32 128, 128
      %29 = vsyncadd [#allocation6], %s28
      %s30 = sshll.u32 [#allocation5], 4
      %s31 = int_to_ptr.vmem [resolvable:$true] %s30
      %36 = dma.hbm_to_vmem [thread:$0]  %s1, 128, %s31, [#allocation6], 64, 64, 4
    $region9: #{tpu_custom_call.1} parent=1 // pred_fallthru
      _
    // Predicated region
    $region10: #{tpu_custom_call.1} parent=1 // pred_check
      _
    $region11: #{tpu_custom_call.1} parent=1 // pred_check_branch
      %38 = sbr.rel (0) target = $region13
    $region12: #{tpu_custom_call.1} parent=1 // pred_region
      _
    $region13: #{tpu_custom_call.1} parent=1 // pred_fallthru
      _
    // Predicated region
    $region14: #{tpu_custom_call.1} parent=1 // pred_check
      _
    $region15: #{tpu_custom_call.1} parent=1 // pred_check_branch
      %40 = sbr.rel (0) target = $region17
    $region16: #{tpu_custom_call.1} parent=1 // pred_region
      %s42 = ssub.s32 512, 512
      %43 = vsyncadd [#allocation6], %s42
      %s44 = sshll.u32 [#allocation7], 4
      %s45 = int_to_ptr.vmem [resolvable:$true] %s44
      %50 = dma.hbm_to_vmem [thread:$0]  %s3, 512, %s45, [#allocation6], 128, 128, 8
    $region17: #{tpu_custom_call.1} parent=1 // pred_fallthru
      _
    // Predicated region
    $region18: #{tpu_custom_call.1} parent=1 // pred_check
      _
    $region19: #{tpu_custom_call.1} parent=1 // pred_check_branch
      %52 = sbr.rel (0) target = $region21
    $region20: #{tpu_custom_call.1} parent=1 // pred_region
      _
    $region21: #{tpu_custom_call.1} parent=1 // pred_fallthru
      _
    // Predicated region
    $region22: #{tpu_custom_call.1} parent=1 // pred_check
      _
    $region23: #{tpu_custom_call.1} parent=1 // pred_check_branch
      %54 = sbr.rel (0) target = $region25
    $region24: #{tpu_custom_call.1} parent=1 // pred_region
      %55 = dma.done [#allocation3], 128
    $region25: #{tpu_custom_call.1} parent=1 // pred_fallthru
      _
    // Predicated region
    $region26: #{tpu_custom_call.1} parent=1 // pred_check
      _
    $region27: #{tpu_custom_call.1} parent=1 // pred_check_branch
      %57 = sbr.rel (0) target = $region29
    $region28: #{tpu_custom_call.1} parent=1 // pred_region
      %58 = dma.done [#allocation6], 128
    $region29: #{tpu_custom_call.1} parent=1 // pred_fallthru
      _
    // Predicated region
    $region30: #{tpu_custom_call.1} parent=1 // pred_check
      _
    $region31: #{tpu_custom_call.1} parent=1 // pred_check_branch
      %60 = sbr.rel (0) target = $region33
    $region32: #{tpu_custom_call.1} parent=1 // pred_region
      %61 = dma.done [#allocation6], 512
    $region33: #{tpu_custom_call.1} parent=1 // pred_fallthru
      _
    %v63 = vld [vmem:[#allocation2] sm:$0xf]
    %v64 = vld [vmem:[#allocation2 + $0x4] sm:$0xf]
    %v65 = vld [vmem:[#allocation5] sm:$0xf]
    %v66 = vld [vmem:[#allocation5 + $0x4] sm:$0xf]
    %v67 = vld [vmem:[%s2] sm:$0x1]
    %v69 = vlaneseq
    %v70 = vshrl.u32 %v69, 7
    %v71 = vsub.s32 0, %v70
    %v72 = vrot.slane %v67, %v71
    %v76 = vunpack.c.l.b16 %v63
    %v77 = vunpack.c.l.b16 %v64
    %v78 = vpack.c.b16 %v77, %v76
    %v81 = vunpack.c.l.b16 %v65
    %v82 = vunpack.c.l.b16 %v66
    %v83 = vpack.c.b16 %v82, %v81
    %vm85 = vcmask 130048
    %v87 = vsel %vm85, %v78, 0
    %89 = vmatprep.subr.bf16.mxu0 0
    %90 = vmatpush1.bf16.msra.mxu0 %v83
    %91 = vmatprep.subr.bf16.mxu0 0
    %92 = vmatpush1.bf16.msra.mxu0 0
    %93 = vmatprep.subr.bf16.mxu0 0
    %94 = vmatpush1.bf16.msra.mxu0 0
    %95 = vmatprep.subr.bf16.mxu0 0
    %96 = vmatpush1.bf16.msra.mxu0 0
    %97 = vmatprep.subr.bf16.mxu0 0
    %98 = vmatpush1.bf16.msra.mxu0 0
    %99 = vmatprep.subr.bf16.mxu0 0
    %100 = vmatpush1.bf16.msra.mxu0 0
    %101 = vmatprep.subr.bf16.mxu0 0
    %102 = vmatpush1.bf16.msra.mxu0 0
    %103 = vmatprep.subr.bf16.mxu0 0
    %104 = vmatpush1.bf16.msra.mxu0 0
    %105 = vmatprep.subr.bf16.mxu0 0
    %106 = vmatpush1.bf16.msra.mxu0 0
    %107 = vmatprep.subr.bf16.mxu0 0
    %108 = vmatpush1.bf16.msra.mxu0 0
    %109 = vmatprep.subr.bf16.mxu0 0
    %110 = vmatpush1.bf16.msra.mxu0 0
    %111 = vmatprep.subr.bf16.mxu0 0
    %112 = vmatpush1.bf16.msra.mxu0 0
    %113 = vmatprep.subr.bf16.mxu0 0
    %114 = vmatpush1.bf16.msra.mxu0 0
    %115 = vmatprep.subr.bf16.mxu0 0
    %116 = vmatpush1.bf16.msra.mxu0 0
    %117 = vmatprep.subr.bf16.mxu0 0
    %118 = vmatpush1.bf16.msra.mxu0 0
    %119 = vmatprep.subr.bf16.mxu0 0
    %120 = vmatpush1.bf16.msra.mxu0 0
    %121 = vmatprep.mubr.bf16.mxu0 0
    %122 = vmatmul.mubr.bf16.gmra.mrb[0].mxu0 %v87
    %v123 = vpop.f32.mrb[0].mxu0
    %v124 = vadd.f32 %v72, %v123
    %v125 = vpop.f32.mrb[0].mxu0
    %v126 = vpop.f32.mrb[0].mxu0
    %v127 = vadd.f32 %v72, %v126
    %v128 = vpop.f32.mrb[0].mxu0
    %129 = vdwg.mxu0
    %v130 = vmax.f32 %v124, 0.0
    %v131 = vmax.f32 %v127, 0.0
    %v132 = vpack.c.bf16 %v131, %v130
    %v133 = vld [vmem:[#allocation7] sm:$0xff]
    %v134 = vld [vmem:[#allocation7 + $0x8] sm:$0xff]
    %v135 = vld [vmem:[#allocation7 + $0x10] sm:$0xff]
    %v136 = vld [vmem:[#allocation7 + $0x18] sm:$0xff]
    %v137 = vld [vmem:[%s4] sm:$0x3]
    %v139 = vlaneseq
    %v140 = vshrl.u32 %v139, 7
    %v141 = vsub.s32 0, %v140
    %v142 = vrot.slane %v137, %v141
    %v143 = vlaneseq
    %v144 = vshrl.u32 %v143, 7
    %v145 = vsub.s32 1, %v144
    %v146 = vrot.slane %v137, %v145
    %v153 = vunpack.c.l.b16 %v133
    %v154 = vunpack.c.h.b16 %v133
    %v155 = vunpack.c.l.b16 %v134
    %v156 = vunpack.c.h.b16 %v134
    %v157 = vunpack.c.l.b16 %v135
    %v158 = vunpack.c.h.b16 %v135
    %v159 = vunpack.c.l.b16 %v136
    %v160 = vunpack.c.h.b16 %v136
    %v161 = vpack.c.b16 %v155, %v153
    %v162 = vpack.c.b16 %v156, %v154
    %v163 = vpack.c.b16 %v159, %v157
    %v164 = vpack.c.b16 %v160, %v158
    %vm169 = vcmask 261120
    %v171 = vsel %vm169, %v132, 0
    %173 = vmatprep.subr.bf16.mxu0 %v162
    %174 = vmatpush1.bf16.msra.mxu0 %v161
    %175 = vmatprep.subr.bf16.mxu0 %v164
    %176 = vmatpush1.bf16.msra.mxu0 %v163
    %177 = vmatprep.subr.bf16.mxu0 0
    %178 = vmatpush1.bf16.msra.mxu0 0
    %179 = vmatprep.subr.bf16.mxu0 0
    %180 = vmatpush1.bf16.msra.mxu0 0
    %181 = vmatprep.subr.bf16.mxu0 0
    %182 = vmatpush1.bf16.msra.mxu0 0
    %183 = vmatprep.subr.bf16.mxu0 0
    %184 = vmatpush1.bf16.msra.mxu0 0
    %185 = vmatprep.subr.bf16.mxu0 0
    %186 = vmatpush1.bf16.msra.mxu0 0
    %187 = vmatprep.subr.bf16.mxu0 0
    %188 = vmatpush1.bf16.msra.mxu0 0
    %189 = vmatprep.subr.bf16.mxu0 0
    %190 = vmatpush1.bf16.msra.mxu0 0
    %191 = vmatprep.subr.bf16.mxu0 0
    %192 = vmatpush1.bf16.msra.mxu0 0
    %193 = vmatprep.subr.bf16.mxu0 0
    %194 = vmatpush1.bf16.msra.mxu0 0
    %195 = vmatprep.subr.bf16.mxu0 0
    %196 = vmatpush1.bf16.msra.mxu0 0
    %197 = vmatprep.subr.bf16.mxu0 0
    %198 = vmatpush1.bf16.msra.mxu0 0
    %199 = vmatprep.subr.bf16.mxu0 0
    %200 = vmatpush1.bf16.msra.mxu0 0
    %201 = vmatprep.subr.bf16.mxu0 0
    %202 = vmatpush1.bf16.msra.mxu0 0
    %203 = vmatprep.subr.bf16.mxu0 0
    %204 = vmatpush1.bf16.msra.mxu0 0
    %205 = vmatprep.mubr.bf16.mxu0 0
    %206 = vmatmul.mubr.bf16.gmra.mrb[0].mxu0 %v171
    %v207 = vpop.f32.mrb[0].mxu0
    %v208 = vadd.f32 %v142, %v207
    %v209 = vpop.f32.mrb[0].mxu0
    %v210 = vadd.f32 %v146, %v209
    %v211 = vpop.f32.mrb[0].mxu0
    %v212 = vadd.f32 %v142, %v211
    %v213 = vpop.f32.mrb[0].mxu0
    %v214 = vadd.f32 %v146, %v213
    %215 = vdwg.mxu0
    %216 = vst [vmem:[#allocation8] sm:$0xff] %v208
    %217 = vst [vmem:[#allocation8 + $0x10] sm:$0xff] %v212
    %v218 = vmul.f32 %v210, 1.442695
    %v219 = vpow.pop %v218
    %v220 = vmul.f32 %v214, 1.442695
    %v221 = vpow.pop %v220
    %222 = vst [vmem:[#allocation8 + $0x8] sm:$0xff] %v219
    %223 = vst [vmem:[#allocation8 + $0x18] sm:$0xff] %v221
    // Predicated region
    $region34: #{tpu_custom_call.1} parent=1 // pred_check
      _
    $region35: #{tpu_custom_call.1} parent=1 // pred_check_branch
      %225 = sbr.rel (0) target = $region37
    $region36: #{tpu_custom_call.1} parent=1 // pred_region
      %s227 = ssub.s32 512, 512
      %228 = vsyncadd [#allocation4], %s227
      %s229 = sshll.u32 [#allocation8], 4
      %s230 = int_to_ptr.vmem [resolvable:$true] %s229
      %235 = dma.vmem_to_hbm [thread:$0]  %s230, 512, %s5, [#allocation4], 256, 256, 16
    $region37: #{tpu_custom_call.1} parent=1 // pred_fallthru
      _
    // Predicated region
    $region38: #{tpu_custom_call.1} parent=1 // pred_check
      _
    $region39: #{tpu_custom_call.1} parent=1 // pred_check_branch
      %237 = sbr.rel (0) target = $region41
    $region40: #{tpu_custom_call.1} parent=1 // pred_region
      %238 = dma.done [#allocation4], 512
    $region41: #{tpu_custom_call.1} parent=1 // pred_fallthru
      _
    %239 = vsyncpa [#allocation3], 1
    %240 = vsyncpa [#allocation6], 1
    %241 = vsyncpa [#allocation4], 1

</llo_original>
